<compile_context>
chip_gen: v5e
topology: v5e:2x2
jax: 0.10.0
libtpu: 0.0.40
codegen_flags: <defaults>
</compile_context>

<pallas_src>
import jax
import jax.numpy as jnp
from jax import lax
from jax.experimental import pallas as pl
from jax.experimental.pallas import tpu as pltpu


def temporal_attention_kernel(x_ref, wq_ref, wk_ref, wv_ref,
                              bq_ref, bk_ref, bv_ref,
                              wproj_ref, bproj_ref, o_ref):
    # x_ref:  (Bblk, T, C)
    # w*_ref: (C, C) in (in, out) layout; b*_ref: (1, C)
    # wq/bq already carry the 1/sqrt(C) scale (folded host-side).
    # o_ref:  (Bblk, T, C)
    Bblk, T, C = x_ref.shape

    # Merge (Bblk, T) -> one lane-dense 2D slab for the projections.
    x2d = x_ref[...].reshape(Bblk * T, C)

    # Three separate projections -- no unaligned column slices of a (., 3C) tile.
    q = jnp.dot(x2d, wq_ref[...], preferred_element_type=jnp.float32) + bq_ref[0]
    k = jnp.dot(x2d, wk_ref[...], preferred_element_type=jnp.float32) + bk_ref[0]
    v = jnp.dot(x2d, wv_ref[...], preferred_element_type=jnp.float32) + bv_ref[0]

    q = q.reshape(Bblk, T, C)
    k = k.reshape(Bblk, T, C)
    v = v.reshape(Bblk, T, C)

    # Scores: batched contraction over the feature axis (no materialized k.T).
    # (Bblk, T, C) x (Bblk, T, C) -> (Bblk, T, T)
    scores = lax.dot_general(
        q, k,
        dimension_numbers=(((2,), (2,)), ((0,), (0,))),
        preferred_element_type=jnp.float32)

    # Numerically-stable softmax numerator; normalization deferred to after PV.
    scores = scores - jnp.max(scores, axis=-1, keepdims=True)
    p = jnp.exp(scores)                                   # (Bblk, T, T)
    denom = jnp.sum(p, axis=-1, keepdims=True)            # (Bblk, T, 1)

    # Weighted sum of values: (Bblk, T, T) x (Bblk, T, C) -> (Bblk, T, C)
    out = lax.dot_general(
        p, v,
        dimension_numbers=(((2,), (1,)), ((0,), (0,))),
        preferred_element_type=jnp.float32)

    # Row-wise softmax normalization applied to the (T, C) output tile:
    # softmax(s) @ v == (exp(s) @ v) * 1/rowsum(exp(s)).  EUP reciprocal ~free.
    out = out * pl.reciprocal(denom, approx=True)

    # Output projection on the merged 2D slab.
    out2d = out.reshape(Bblk * T, C)
    y = jnp.dot(out2d, wproj_ref[...], preferred_element_type=jnp.float32) + bproj_ref[0]

    o_ref[...] = y.reshape(Bblk, T, C).astype(o_ref.dtype)


def _pick_batch_block(B, T, C, vmem_budget_bytes):
    """Largest divisor of B whose per-step f32 working set fits the budget."""
    for bb in (16, 8, 4, 2, 1):
        if B % bb != 0:
            continue
        io_bytes = 2 * (2 * bb * T * C) * 4                 # x + out blocks, double-buffered
        interm_bytes = (4 * bb * T * C + bb * T * T) * 4    # q, k, v, out + scores
        weight_bytes = (4 * C * C + 4 * C) * 4 * 2          # weights/biases, double-buffered
        if io_bytes + interm_bytes + weight_bytes <= vmem_budget_bytes:
            return bb
    return 1


def temporal_attention(x, w_qkv, b_qkv, w_proj, b_proj, *, batch_block=None):
    """x: (B, T, C) f32; w_qkv: (3C, C) torch layout; b_qkv: (3C,);
    w_proj: (C, C) torch layout; b_proj: (C,)."""
    B, T, C = x.shape
    w_qkv = jnp.asarray(w_qkv)
    b_qkv = jnp.asarray(b_qkv)
    scale = jnp.float32(C) ** -0.5

    # Host-side split + transpose of the torch (out, in) qkv weight into three
    # (in, out) matrices; fold the 1/sqrt(C) attention scale into Wq / bq so the
    # kernel never multiplies q by the scale.
    wq = w_qkv[0 * C:1 * C].T * scale    # (C, C)
    wk = w_qkv[1 * C:2 * C].T            # (C, C)
    wv = w_qkv[2 * C:3 * C].T            # (C, C)
    bq = (b_qkv[0 * C:1 * C] * scale).reshape(1, C)
    bk = b_qkv[1 * C:2 * C].reshape(1, C)
    bv = b_qkv[2 * C:3 * C].reshape(1, C)
    wproj = jnp.asarray(w_proj).T        # (C, C)
    bproj = jnp.asarray(b_proj).reshape(1, C)

    vmem_limit_bytes = 32 * 1024 * 1024
    # Fold several batches per grid step to amortize per-step pipeline overhead,
    # bounded by the scoped-VMEM budget (leave ~25% headroom for the compiler).
    if batch_block is None:
        batch_block = _pick_batch_block(B, T, C, (3 * vmem_limit_bytes) // 4)
    assert B % batch_block == 0, "batch_block must divide B"
    grid = (B // batch_block,)

    # Advisory cost estimate for XLA's scheduler.
    flops = B * (8 * T * C * C + 4 * T * T * C)          # 4 Linear-style + 2 attn matmuls
    transcendentals = B * T * T                           # exp in softmax
    bytes_accessed = (2 * B * T * C + 4 * C * C + 4 * C) * 4

    wspec = pl.BlockSpec((C, C), lambda b: (0, 0))
    bspec = pl.BlockSpec((1, C), lambda b: (0, 0))
    xspec = pl.BlockSpec((batch_block, T, C), lambda b: (b, 0, 0))

    return pl.pallas_call(
        temporal_attention_kernel,
        out_shape=jax.ShapeDtypeStruct((B, T, C), x.dtype),
        grid_spec=pltpu.PrefetchScalarGridSpec(
            num_scalar_prefetch=0,
            grid=grid,
            in_specs=[
                xspec,                 # x
                wspec, wspec, wspec,   # wq (pre-scaled), wk, wv
                bspec, bspec, bspec,   # bq (pre-scaled), bk, bv
                wspec, bspec,          # wproj, bproj
            ],
            out_specs=pl.BlockSpec((batch_block, T, C), lambda b: (b, 0, 0)),
        ),
        compiler_params=pltpu.CompilerParams(
            dimension_semantics=("parallel",),
            # Explicit scoped-VMEM budget; safe on v5e/v6e (128 MiB physical)
            # and within v7x's 64 MiB physical VMEM.
            vmem_limit_bytes=vmem_limit_bytes,
        ),
        cost_estimate=pl.CostEstimate(
            flops=flops,
            transcendentals=transcendentals,
            bytes_accessed=bytes_accessed,
        ),
    )(x, wq, wk, wv, bq, bk, bv, wproj, bproj)


def reference_temporal_attention(x, w_qkv, b_qkv, w_proj, b_proj):
    """Pure-JAX reference matching the PyTorch forward exactly."""
    B, T, C = x.shape
    qkv = jnp.einsum("btc,oc->bto", x, w_qkv) + b_qkv          # (B, T, 3C)
    q, k, v = qkv[..., :C], qkv[..., C:2 * C], qkv[..., 2 * C:]
    attn = jnp.einsum("btc,bsc->bts", q, k) * (C ** -0.5)
    attn = jax.nn.softmax(attn, axis=-1)
    out = jnp.einsum("bts,bsc->btc", attn, v)
    return jnp.einsum("btc,oc->bto", out, w_proj) + b_proj


if __name__ == "__main__":
    B, T, C = 2, 8, 32
    key = jax.random.PRNGKey(0)
    kx, kw1, kb1, kw2, kb2 = jax.random.split(key, 5)

    x = jax.random.normal(kx, (B, T, C), dtype=jnp.float32)
    # deterministic synthetic parameters (torch nn.Linear layouts: (out, in))
    w_qkv = jax.random.normal(kw1, (3 * C, C), dtype=jnp.float32) * 0.1
    b_qkv = jax.random.normal(kb1, (3 * C,), dtype=jnp.float32) * 0.1
    w_proj = jax.random.normal(kw2, (C, C), dtype=jnp.float32) * 0.1
    b_proj = jax.random.normal(kb2, (C,), dtype=jnp.float32) * 0.1

    y = temporal_attention(x, w_qkv, b_qkv, w_proj, b_proj)
    y = jax.block_until_ready(y)

    y_ref = reference_temporal_attention(x, w_qkv, b_qkv, w_proj, b_proj)
    assert y.shape == (B, T, C)
    # Tolerance slightly relaxed vs. exact f32 because the softmax denominator
    # uses the approximate EUP reciprocal (pl.reciprocal(approx=True)).
    assert jnp.allclose(y, y_ref, atol=2e-3, rtol=2e-3), "mismatch vs reference"

    print("KERNEL_OK")
</pallas_src>

<mosaic_0001>
module attributes {stable_mosaic.version = 11 : i64} {
  func.func @temporal_attention_kernel(%arg0: i32, %arg1: memref<2x8x32xf32, #tpu.memory_space<vmem>>, %arg2: memref<32x32xf32, #tpu.memory_space<vmem>>, %arg3: memref<32x32xf32, #tpu.memory_space<vmem>>, %arg4: memref<32x32xf32, #tpu.memory_space<vmem>>, %arg5: memref<1x32xf32, #tpu.memory_space<vmem>>, %arg6: memref<1x32xf32, #tpu.memory_space<vmem>>, %arg7: memref<1x32xf32, #tpu.memory_space<vmem>>, %arg8: memref<32x32xf32, #tpu.memory_space<vmem>>, %arg9: memref<1x32xf32, #tpu.memory_space<vmem>>, %arg10: memref<2x8x32xf32, #tpu.memory_space<vmem>>) attributes {dimension_semantics = [#tpu.dimension_semantics<parallel>], iteration_bounds = array<i64: 1>, scalar_prefetch = 0 : i64, scratch_operands = 0 : i64, tpu.core_type = #tpu.core_type<tc>, window_params = [{transform_indices = @transform_0, window_bounds = array<i64: 2, 8, 32>}, {pipeline_mode = #tpu.pipeline_mode<synchronous>, transform_indices = @transform_1, window_bounds = array<i64: 32, 32>}, {pipeline_mode = #tpu.pipeline_mode<synchronous>, transform_indices = @transform_2, window_bounds = array<i64: 32, 32>}, {pipeline_mode = #tpu.pipeline_mode<synchronous>, transform_indices = @transform_3, window_bounds = array<i64: 32, 32>}, {pipeline_mode = #tpu.pipeline_mode<synchronous>, transform_indices = @transform_4, window_bounds = array<i64: 1, 32>}, {pipeline_mode = #tpu.pipeline_mode<synchronous>, transform_indices = @transform_5, window_bounds = array<i64: 1, 32>}, {pipeline_mode = #tpu.pipeline_mode<synchronous>, transform_indices = @transform_6, window_bounds = array<i64: 1, 32>}, {pipeline_mode = #tpu.pipeline_mode<synchronous>, transform_indices = @transform_7, window_bounds = array<i64: 32, 32>}, {pipeline_mode = #tpu.pipeline_mode<synchronous>, transform_indices = @transform_8, window_bounds = array<i64: 1, 32>}, {transform_indices = @transform_9, window_bounds = array<i64: 2, 8, 32>}]} {
    %c0 = arith.constant 0 : index
    %c0_0 = arith.constant 0 : index
    %c0_1 = arith.constant 0 : index
    %0 = vector.load %arg1[%c0, %c0_0, %c0_1] : memref<2x8x32xf32, #tpu.memory_space<vmem>>, vector<2x8x32xf32>
    %1 = vector.shape_cast %0 : vector<2x8x32xf32> to vector<16x32xf32>
    %c0_2 = arith.constant 0 : index
    %c0_3 = arith.constant 0 : index
    %2 = vector.load %arg2[%c0_2, %c0_3] : memref<32x32xf32, #tpu.memory_space<vmem>>, vector<32x32xf32>
    %cst = arith.constant dense<0.000000e+00> : vector<16x32xf32>
    %3 = tpu.matmul %1, %2, %cst {dimension_numbers = #tpu.dot_dimension_numbers<[1], [0], [0], [1], [0, 0, 1, 1], [], []>} : vector<16x32xf32>, vector<32x32xf32>, vector<16x32xf32> -> vector<16x32xf32>
    %c0_4 = arith.constant 0 : index
    %c0_5 = arith.constant 0 : index
    %4 = vector.load %arg5[%c0_4, %c0_5] : memref<1x32xf32, #tpu.memory_space<vmem>>, vector<1x32xf32>
    %5 = vector.shape_cast %4 : vector<1x32xf32> to vector<32xf32>
    %6 = vector.shape_cast %5 : vector<32xf32> to vector<1x32xf32>
    %7 = vector.broadcast %6 : vector<1x32xf32> to vector<16x32xf32>
    %8 = arith.addf %3, %7 : vector<16x32xf32>
    %c0_6 = arith.constant 0 : index
    %c0_7 = arith.constant 0 : index
    %9 = vector.load %arg3[%c0_6, %c0_7] : memref<32x32xf32, #tpu.memory_space<vmem>>, vector<32x32xf32>
    %cst_8 = arith.constant dense<0.000000e+00> : vector<16x32xf32>
    %10 = tpu.matmul %1, %9, %cst_8 {dimension_numbers = #tpu.dot_dimension_numbers<[1], [0], [0], [1], [0, 0, 1, 1], [], []>} : vector<16x32xf32>, vector<32x32xf32>, vector<16x32xf32> -> vector<16x32xf32>
    %c0_9 = arith.constant 0 : index
    %c0_10 = arith.constant 0 : index
    %11 = vector.load %arg6[%c0_9, %c0_10] : memref<1x32xf32, #tpu.memory_space<vmem>>, vector<1x32xf32>
    %12 = vector.shape_cast %11 : vector<1x32xf32> to vector<32xf32>
    %13 = vector.shape_cast %12 : vector<32xf32> to vector<1x32xf32>
    %14 = vector.broadcast %13 : vector<1x32xf32> to vector<16x32xf32>
    %15 = arith.addf %10, %14 : vector<16x32xf32>
    %c0_11 = arith.constant 0 : index
    %c0_12 = arith.constant 0 : index
    %16 = vector.load %arg4[%c0_11, %c0_12] : memref<32x32xf32, #tpu.memory_space<vmem>>, vector<32x32xf32>
    %cst_13 = arith.constant dense<0.000000e+00> : vector<16x32xf32>
    %17 = tpu.matmul %1, %16, %cst_13 {dimension_numbers = #tpu.dot_dimension_numbers<[1], [0], [0], [1], [0, 0, 1, 1], [], []>} : vector<16x32xf32>, vector<32x32xf32>, vector<16x32xf32> -> vector<16x32xf32>
    %c0_14 = arith.constant 0 : index
    %c0_15 = arith.constant 0 : index
    %18 = vector.load %arg7[%c0_14, %c0_15] : memref<1x32xf32, #tpu.memory_space<vmem>>, vector<1x32xf32>
    %19 = vector.shape_cast %18 : vector<1x32xf32> to vector<32xf32>
    %20 = vector.shape_cast %19 : vector<32xf32> to vector<1x32xf32>
    %21 = vector.broadcast %20 : vector<1x32xf32> to vector<16x32xf32>
    %22 = arith.addf %17, %21 : vector<16x32xf32>
    %23 = vector.shape_cast %8 : vector<16x32xf32> to vector<2x8x32xf32>
    %24 = vector.shape_cast %15 : vector<16x32xf32> to vector<2x8x32xf32>
    %25 = vector.shape_cast %22 : vector<16x32xf32> to vector<2x8x32xf32>
    %cst_16 = arith.constant dense<0.000000e+00> : vector<2x8x8xf32>
    %26 = tpu.matmul %23, %24, %cst_16 {dimension_numbers = #tpu.dot_dimension_numbers<[2], [2], [1], [1], [0, 0, 0, 1, 1, 1], [0], [0]>} : vector<2x8x32xf32>, vector<2x8x32xf32>, vector<2x8x8xf32> -> vector<2x8x8xf32>
    %cst_17 = arith.constant dense<0xFF800000> : vector<2x8xf32>
    %27 = vector.multi_reduction <maximumf>, %26, %cst_17 [2] : vector<2x8x8xf32> to vector<2x8xf32>
    %28 = vector.shape_cast %27 : vector<2x8xf32> to vector<2x8x1xf32>
    %29 = vector.broadcast %28 : vector<2x8x1xf32> to vector<2x8x8xf32>
    %30 = arith.subf %26, %29 : vector<2x8x8xf32>
    %31 = math.exp %30 : vector<2x8x8xf32>
    %cst_18 = arith.constant dense<0.000000e+00> : vector<2x8xf32>
    %32 = vector.multi_reduction <add>, %31, %cst_18 [2] : vector<2x8x8xf32> to vector<2x8xf32>
    %33 = vector.shape_cast %32 : vector<2x8xf32> to vector<2x8x1xf32>
    %cst_19 = arith.constant dense<0.000000e+00> : vector<2x8x32xf32>
    %34 = tpu.matmul %31, %25, %cst_19 {dimension_numbers = #tpu.dot_dimension_numbers<[2], [1], [1], [2], [0, 0, 0, 1, 1, 2], [0], [0]>} : vector<2x8x8xf32>, vector<2x8x32xf32>, vector<2x8x32xf32> -> vector<2x8x32xf32>
    %35 = tpu.reciprocal %33 {approx = true} : vector<2x8x1xf32> -> vector<2x8x1xf32>
    %36 = vector.broadcast %35 : vector<2x8x1xf32> to vector<2x8x32xf32>
    %37 = arith.mulf %34, %36 : vector<2x8x32xf32>
    %38 = vector.shape_cast %37 : vector<2x8x32xf32> to vector<16x32xf32>
    %c0_20 = arith.constant 0 : index
    %c0_21 = arith.constant 0 : index
    %39 = vector.load %arg8[%c0_20, %c0_21] : memref<32x32xf32, #tpu.memory_space<vmem>>, vector<32x32xf32>
    %cst_22 = arith.constant dense<0.000000e+00> : vector<16x32xf32>
    %40 = tpu.matmul %38, %39, %cst_22 {dimension_numbers = #tpu.dot_dimension_numbers<[1], [0], [0], [1], [0, 0, 1, 1], [], []>} : vector<16x32xf32>, vector<32x32xf32>, vector<16x32xf32> -> vector<16x32xf32>
    %c0_23 = arith.constant 0 : index
    %c0_24 = arith.constant 0 : index
    %41 = vector.load %arg9[%c0_23, %c0_24] : memref<1x32xf32, #tpu.memory_space<vmem>>, vector<1x32xf32>
    %42 = vector.shape_cast %41 : vector<1x32xf32> to vector<32xf32>
    %43 = vector.shape_cast %42 : vector<32xf32> to vector<1x32xf32>
    %44 = vector.broadcast %43 : vector<1x32xf32> to vector<16x32xf32>
    %45 = arith.addf %40, %44 : vector<16x32xf32>
    %46 = vector.shape_cast %45 : vector<16x32xf32> to vector<2x8x32xf32>
    %c0_25 = arith.constant 0 : index
    %c0_26 = arith.constant 0 : index
    %c0_27 = arith.constant 0 : index
    %47 = vector.load %arg10[%c0_25, %c0_26, %c0_27] : memref<2x8x32xf32, #tpu.memory_space<vmem>>, vector<2x8x32xf32>
    tpu.vector_store %arg10[%c0_25, %c0_26, %c0_27], %46 {strides = array<i32>} : memref<2x8x32xf32, #tpu.memory_space<vmem>>, vector<2x8x32xf32>,
    return
  }
  func.func @transform_0(%arg0: i32) -> (i32, i32, i32) {
    %c0_i32 = arith.constant 0 : i32
    %c0_i32_0 = arith.constant 0 : i32
    %c0_i32_1 = arith.constant 0 : i32
    return %arg0, %c0_i32, %c0_i32_0 : i32, i32, i32
  }
  func.func @transform_1(%arg0: i32) -> (i32, i32) {
    %c0_i32 = arith.constant 0 : i32
    %c0_i32_0 = arith.constant 0 : i32
    %c0_i32_1 = arith.constant 0 : i32
    return %c0_i32, %c0_i32_0 : i32, i32
  }
  func.func @transform_2(%arg0: i32) -> (i32, i32) {
    %c0_i32 = arith.constant 0 : i32
    %c0_i32_0 = arith.constant 0 : i32
    %c0_i32_1 = arith.constant 0 : i32
    return %c0_i32, %c0_i32_0 : i32, i32
  }
  func.func @transform_3(%arg0: i32) -> (i32, i32) {
    %c0_i32 = arith.constant 0 : i32
    %c0_i32_0 = arith.constant 0 : i32
    %c0_i32_1 = arith.constant 0 : i32
    return %c0_i32, %c0_i32_0 : i32, i32
  }
  func.func @transform_4(%arg0: i32) -> (i32, i32) {
    %c0_i32 = arith.constant 0 : i32
    %c0_i32_0 = arith.constant 0 : i32
    %c0_i32_1 = arith.constant 0 : i32
    return %c0_i32, %c0_i32_0 : i32, i32
  }
  func.func @transform_5(%arg0: i32) -> (i32, i32) {
    %c0_i32 = arith.constant 0 : i32
    %c0_i32_0 = arith.constant 0 : i32
    %c0_i32_1 = arith.constant 0 : i32
    return %c0_i32, %c0_i32_0 : i32, i32
  }
  func.func @transform_6(%arg0: i32) -> (i32, i32) {
    %c0_i32 = arith.constant 0 : i32
    %c0_i32_0 = arith.constant 0 : i32
    %c0_i32_1 = arith.constant 0 : i32
    return %c0_i32, %c0_i32_0 : i32, i32
  }
  func.func @transform_7(%arg0: i32) -> (i32, i32) {
    %c0_i32 = arith.constant 0 : i32
    %c0_i32_0 = arith.constant 0 : i32
    %c0_i32_1 = arith.constant 0 : i32
    return %c0_i32, %c0_i32_0 : i32, i32
  }
  func.func @transform_8(%arg0: i32) -> (i32, i32) {
    %c0_i32 = arith.constant 0 : i32
    %c0_i32_0 = arith.constant 0 : i32
    %c0_i32_1 = arith.constant 0 : i32
    return %c0_i32, %c0_i32_0 : i32, i32
  }
  func.func @transform_9(%arg0: i32) -> (i32, i32, i32) {
    %c0_i32 = arith.constant 0 : i32
    %c0_i32_0 = arith.constant 0 : i32
    %c0_i32_1 = arith.constant 0 : i32
    return %arg0, %c0_i32, %c0_i32_0 : i32, i32, i32
  }
}

</mosaic_0001>

<llo_original>
// kernel: tpu_custom_call.1
$region0: #{tpu_custom_call.1}
  #allocation0 [shape = 'u32[]', space=smem, size = 0x4, offset = 0x4, fixed_abs, tag = 'smem constant byte address 0x4 - core index']
  #allocation1 [shape = 'u32[72,128]{1,0:T(1,128)}', space=vmem, size = 0x9000, scoped, tag = 'internal scratch']
  %s0 = inlined_call_operand.hbm [shape: f32[2,8,32], index: 0, kind: input, shape index: {}]
  %s1 = inlined_call_operand.hbm [shape: f32[32,32], index: 1, kind: input, shape index: {}]
  %s2 = inlined_call_operand.hbm [shape: f32[32,32], index: 2, kind: input, shape index: {}]
  %s3 = inlined_call_operand.hbm [shape: f32[32,32], index: 3, kind: input, shape index: {}]
  %s4 = inlined_call_operand.vmem [shape: f32[1,32], index: 4, kind: input, shape index: {}]
  %s5 = inlined_call_operand.vmem [shape: f32[1,32], index: 5, kind: input, shape index: {}]
  %s6 = inlined_call_operand.vmem [shape: f32[1,32], index: 6, kind: input, shape index: {}]
  %s7 = inlined_call_operand.hbm [shape: f32[32,32], index: 7, kind: input, shape index: {}]
  %s8 = inlined_call_operand.vmem [shape: f32[1,32], index: 8, kind: input, shape index: {}]
  %s9 = inlined_call_operand.hbm [shape: f32[2,8,32], index: 9, kind: output, shape index: {}]
  %s10 = sld [smem:[#allocation0]]
  $region66: #{tpu_custom_call.1} parent=0
    _
  %s12 = ssub.s32 1, %s10
  %s13 = scalar_select 0, %s12, %s10
  $region1: #{tpu_custom_call.1} parent=0
    #allocation2 [shape = 'u8[8192]{0}', space=vmem, size = 0x2000, scoped, tag = 'input window, operand 0, single buffered']
    #allocation3 [shape = 's32[1]{0}', space=sflag, size = 0x4, scoped, tag = 'scoped memory for tpu_custom_call.1']
    #allocation4 [shape = 's32[1]{0}', space=sflag, size = 0x4, scoped, tag = 'scoped memory for tpu_custom_call.1']
    #allocation5 [shape = 'u8[16384]{0}', space=vmem, size = 0x4000, scoped, tag = 'input window, operand 1, single buffered']
    #allocation6 [shape = 's32[1]{0}', space=sflag, size = 0x4, scoped, tag = 'scoped memory for tpu_custom_call.1']
    #allocation7 [shape = 'u8[16384]{0}', space=vmem, size = 0x4000, scoped, tag = 'input window, operand 2, single buffered']
    #allocation8 [shape = 'u8[16384]{0}', space=vmem, size = 0x4000, scoped, tag = 'input window, operand 3, single buffered']
    #allocation9 [shape = 's32[1]{0}', space=sflag, size = 0x4, scoped, tag = 'scoped memory for tpu_custom_call.1']
    #allocation10 [shape = 'u8[16384]{0}', space=vmem, size = 0x4000, scoped, tag = 'input window, operand 7, single buffered']
    #allocation11 [shape = 'u8[8192]{0}', space=vmem, size = 0x2000, scoped, tag = 'output window, operand 0, single buffered']
    %14 = vsyncpa [#allocation3], 0
    %15 = vsyncpa [#allocation6], 0
    %16 = vsyncpa [#allocation9], 0
    %17 = vsyncpa [#allocation4], 0
    // Predicated region
    $region2: #{tpu_custom_call.1} parent=1 // pred_check
      _
    $region3: #{tpu_custom_call.1} parent=1 // pred_check_branch
      %19 = sbr.rel (0) target = $region5
    $region4: #{tpu_custom_call.1} parent=1 // pred_region
      %21 = vsyncadd [#allocation3], 0
      %s22 = sshll.u32 %s0, 4
      %s23 = int_to_ptr.hbm [resolvable:$true] %s22
      %s24 = sshll.u32 [#allocation2], 4
      %s25 = int_to_ptr.vmem [resolvable:$true] %s24
      %30 = dma.hbm_to_vmem [thread:$0]  %s23, 256, %s25, [#allocation3], 128, 128, 8
    $region5: #{tpu_custom_call.1} parent=1 // pred_fallthru
      _
    // Predicated region
    $region6: #{tpu_custom_call.1} parent=1 // pred_check
      _
    $region7: #{tpu_custom_call.1} parent=1 // pred_check_branch
      %32 = sbr.rel (0) target = $region9
    $region8: #{tpu_custom_call.1} parent=1 // pred_region
      %34 = vsyncadd [#allocation6], 0
      %s35 = sshll.u32 %s1, 4
      %s36 = int_to_ptr.hbm [resolvable:$true] %s35
      %s37 = sshll.u32 [#allocation5], 4
      %s38 = int_to_ptr.vmem [resolvable:$true] %s37
      %43 = dma.hbm_to_vmem [thread:$0]  %s36, 512, %s38, [#allocation6], 128, 128, 8
    $region9: #{tpu_custom_call.1} parent=1 // pred_fallthru
      _
    // Predicated region
    $region10: #{tpu_custom_call.1} parent=1 // pred_check
      _
    $region11: #{tpu_custom_call.1} parent=1 // pred_check_branch
      %45 = sbr.rel (0) target = $region13
    $region12: #{tpu_custom_call.1} parent=1 // pred_region
      %47 = vsyncadd [#allocation6], 0
      %s48 = sshll.u32 %s2, 4
      %s49 = int_to_ptr.hbm [resolvable:$true] %s48
      %s50 = sshll.u32 [#allocation7], 4
      %s51 = int_to_ptr.vmem [resolvable:$true] %s50
      %56 = dma.hbm_to_vmem [thread:$0]  %s49, 512, %s51, [#allocation6], 128, 128, 8
    $region13: #{tpu_custom_call.1} parent=1 // pred_fallthru
      _
    // Predicated region
    $region14: #{tpu_custom_call.1} parent=1 // pred_check
      _
    $region15: #{tpu_custom_call.1} parent=1 // pred_check_branch
      %58 = sbr.rel (0) target = $region17
    $region16: #{tpu_custom_call.1} parent=1 // pred_region
      %60 = vsyncadd [#allocation9], 0
      %s61 = sshll.u32 %s3, 4
      %s62 = int_to_ptr.hbm [resolvable:$true] %s61
      %s63 = sshll.u32 [#allocation8], 4
      %s64 = int_to_ptr.vmem [resolvable:$true] %s63
      %69 = dma.hbm_to_vmem [thread:$0]  %s62, 512, %s64, [#allocation9], 128, 128, 8
    $region17: #{tpu_custom_call.1} parent=1 // pred_fallthru
      _
    // Predicated region
    $region18: #{tpu_custom_call.1} parent=1 // pred_check
      _
    $region19: #{tpu_custom_call.1} parent=1 // pred_check_branch
      %71 = sbr.rel (0) target = $region21
    $region20: #{tpu_custom_call.1} parent=1 // pred_region
      _
    $region21: #{tpu_custom_call.1} parent=1 // pred_fallthru
      _
    // Predicated region
    $region22: #{tpu_custom_call.1} parent=1 // pred_check
      _
    $region23: #{tpu_custom_call.1} parent=1 // pred_check_branch
      %73 = sbr.rel (0) target = $region25
    $region24: #{tpu_custom_call.1} parent=1 // pred_region
      _
    $region25: #{tpu_custom_call.1} parent=1 // pred_fallthru
      _
    // Predicated region
    $region26: #{tpu_custom_call.1} parent=1 // pred_check
      _
    $region27: #{tpu_custom_call.1} parent=1 // pred_check_branch
      %75 = sbr.rel (0) target = $region29
    $region28: #{tpu_custom_call.1} parent=1 // pred_region
      _
    $region29: #{tpu_custom_call.1} parent=1 // pred_fallthru
      _
    // Predicated region
    $region30: #{tpu_custom_call.1} parent=1 // pred_check
      _
    $region31: #{tpu_custom_call.1} parent=1 // pred_check_branch
      %77 = sbr.rel (0) target = $region33
    $region32: #{tpu_custom_call.1} parent=1 // pred_region
      %79 = vsyncadd [#allocation9], 0
      %s80 = sshll.u32 %s7, 4
      %s81 = int_to_ptr.hbm [resolvable:$true] %s80
      %s82 = sshll.u32 [#allocation10], 4
      %s83 = int_to_ptr.vmem [resolvable:$true] %s82
      %88 = dma.hbm_to_vmem [thread:$0]  %s81, 512, %s83, [#allocation9], 128, 128, 8
    $region33: #{tpu_custom_call.1} parent=1 // pred_fallthru
      _
    // Predicated region
    $region34: #{tpu_custom_call.1} parent=1 // pred_check
      _
    $region35: #{tpu_custom_call.1} parent=1 // pred_check_branch
      %90 = sbr.rel (0) target = $region37
    $region36: #{tpu_custom_call.1} parent=1 // pred_region
      _
    $region37: #{tpu_custom_call.1} parent=1 // pred_fallthru
      _
    // Predicated region
    $region38: #{tpu_custom_call.1} parent=1 // pred_check
      _
    $region39: #{tpu_custom_call.1} parent=1 // pred_check_branch
      %92 = sbr.rel (0) target = $region41
    $region40: #{tpu_custom_call.1} parent=1 // pred_region
      %94 = dma.done [#allocation3], 256
    $region41: #{tpu_custom_call.1} parent=1 // pred_fallthru
      _
    // Predicated region
    $region42: #{tpu_custom_call.1} parent=1 // pred_check
      _
    $region43: #{tpu_custom_call.1} parent=1 // pred_check_branch
      %96 = sbr.rel (0) target = $region45
    $region44: #{tpu_custom_call.1} parent=1 // pred_region
      %98 = dma.done [#allocation6], 512
    $region45: #{tpu_custom_call.1} parent=1 // pred_fallthru
      _
    // Predicated region
    $region46: #{tpu_custom_call.1} parent=1 // pred_check
      _
    $region47: #{tpu_custom_call.1} parent=1 // pred_check_branch
      %100 = sbr.rel (0) target = $region49
    $region48: #{tpu_custom_call.1} parent=1 // pred_region
      %102 = dma.done [#allocation6], 512
    $region49: #{tpu_custom_call.1} parent=1 // pred_fallthru
      _
    // Predicated region
    $region50: #{tpu_custom_call.1} parent=1 // pred_check
      _
    $region51: #{tpu_custom_call.1} parent=1 // pred_check_branch
      %104 = sbr.rel (0) target = $region53
    $region52: #{tpu_custom_call.1} parent=1 // pred_region
      %106 = dma.done [#allocation9], 512
    $region53: #{tpu_custom_call.1} parent=1 // pred_fallthru
      _
    // Predicated region
    $region54: #{tpu_custom_call.1} parent=1 // pred_check
      _
    $region55: #{tpu_custom_call.1} parent=1 // pred_check_branch
      %108 = sbr.rel (0) target = $region57
    $region56: #{tpu_custom_call.1} parent=1 // pred_region
      %110 = dma.done [#allocation9], 512
    $region57: #{tpu_custom_call.1} parent=1 // pred_fallthru
      _
    %v111 = vld [vmem:[#allocation2] sm:$0xff]
    %v112 = vld [vmem:[#allocation2 + $0x8] sm:$0xff]
    %v113 = vld [vmem:[#allocation5] sm:$0xff]
    %v114 = vld [vmem:[#allocation5 + $0x8] sm:$0xff]
    %v115 = vld [vmem:[#allocation5 + $0x10] sm:$0xff]
    %v116 = vld [vmem:[#allocation5 + $0x18] sm:$0xff]
    %v117 = vld [vmem:[%s4] sm:$0x1]
    %v119 = vperm.slane %v117, 0
    %vm121 = vcmask 261120
    %v123 = vsel %vm121, %v111, 0
    %v126 = vsel %vm121, %v112, 0
    %128 = vmatpush.msra.mxu0 0.0
    %129 = vmatpush.msra.mxu0 0.0
    %130 = vmatpush.msra.mxu0 0.0
    %131 = vmatpush.msra.mxu0 0.0
    %132 = vmatpush.msra.mxu0 0.0
    %133 = vmatpush.msra.mxu0 0.0
    %134 = vmatpush.msra.mxu0 0.0
    %135 = vmatpush.msra.mxu0 0.0
    %136 = vmatpush.msra.mxu0 0.0
    %137 = vmatpush.msra.mxu0 0.0
    %138 = vmatpush.msra.mxu0 0.0
    %139 = vmatpush.msra.mxu0 0.0
    %140 = vmatpush.msra.mxu0 %v116
    %141 = vmatpush.msra.mxu0 %v115
    %142 = vmatpush.msra.mxu0 %v114
    %143 = vmatpush.msra.mxu0 %v113
    %144 = vmatmul.f32.gmra.mxu0 %v123
    %v145 = vpop.f32.mrf.mxu0
    %v146 = vadd.f32 %v119, %v145
    %147 = vmatmul.f32.gmra.mxu0 %v126
    %v148 = vpop.f32.mrf.mxu0
    %v149 = vadd.f32 %v119, %v148
    %150 = vdwg.mxu0
    %v151 = vld [vmem:[#allocation7] sm:$0xff]
    %v152 = vld [vmem:[#allocation7 + $0x8] sm:$0xff]
    %v153 = vld [vmem:[#allocation7 + $0x10] sm:$0xff]
    %v154 = vld [vmem:[#allocation7 + $0x18] sm:$0xff]
    %v155 = vld [vmem:[%s5] sm:$0x1]
    %v157 = vperm.slane %v155, 0
    %159 = vmatpush.msra.mxu0 0.0
    %160 = vmatpush.msra.mxu0 0.0
    %161 = vmatpush.msra.mxu0 0.0
    %162 = vmatpush.msra.mxu0 0.0
    %163 = vmatpush.msra.mxu0 0.0
    %164 = vmatpush.msra.mxu0 0.0
    %165 = vmatpush.msra.mxu0 0.0
    %166 = vmatpush.msra.mxu0 0.0
    %167 = vmatpush.msra.mxu0 0.0
    %168 = vmatpush.msra.mxu0 0.0
    %169 = vmatpush.msra.mxu0 0.0
    %170 = vmatpush.msra.mxu0 0.0
    %171 = vmatpush.msra.mxu0 %v154
    %172 = vmatpush.msra.mxu0 %v153
    %173 = vmatpush.msra.mxu0 %v152
    %174 = vmatpush.msra.mxu0 %v151
    %175 = vmatmul.f32.gmra.mxu0 %v123
    %v176 = vpop.f32.mrf.mxu0
    %v177 = vadd.f32 %v157, %v176
    %178 = vmatmul.f32.gmra.mxu0 %v126
    %v179 = vpop.f32.mrf.mxu0
    %v180 = vadd.f32 %v157, %v179
    %181 = vdwg.mxu0
    %v182 = vld [vmem:[#allocation8] sm:$0xff]
    %v183 = vld [vmem:[#allocation8 + $0x8] sm:$0xff]
    %v184 = vld [vmem:[#allocation8 + $0x10] sm:$0xff]
    %v185 = vld [vmem:[#allocation8 + $0x18] sm:$0xff]
    %v186 = vld [vmem:[%s6] sm:$0x1]
    %v188 = vperm.slane %v186, 0
    %190 = vmatpush.msra.mxu0 0.0
    %191 = vmatpush.msra.mxu0 0.0
    %192 = vmatpush.msra.mxu0 0.0
    %193 = vmatpush.msra.mxu0 0.0
    %194 = vmatpush.msra.mxu0 0.0
    %195 = vmatpush.msra.mxu0 0.0
    %196 = vmatpush.msra.mxu0 0.0
    %197 = vmatpush.msra.mxu0 0.0
    %198 = vmatpush.msra.mxu0 0.0
    %199 = vmatpush.msra.mxu0 0.0
    %200 = vmatpush.msra.mxu0 0.0
    %201 = vmatpush.msra.mxu0 0.0
    %202 = vmatpush.msra.mxu0 %v185
    %203 = vmatpush.msra.mxu0 %v184
    %204 = vmatpush.msra.mxu0 %v183
    %205 = vmatpush.msra.mxu0 %v182
    %206 = vmatmul.f32.gmra.mxu0 %v123
    %v207 = vpop.f32.mrf.mxu0
    %v208 = vadd.f32 %v188, %v207
    %209 = vmatmul.f32.gmra.mxu0 %v126
    %v210 = vpop.f32.mrf.mxu0
    %v211 = vadd.f32 %v188, %v210
    %212 = vdwg.mxu0
    %v214 = vsel %vm121, %v146, 0
    %v217 = vsel %vm121, %v177, 0
    %219 = vmatpush.xpose.msra.mxu0 0.0
    %220 = vmatpush.xpose.msra.mxu0 0.0
    %221 = vmatpush.xpose.msra.mxu0 0.0
    %222 = vmatpush.xpose.msra.mxu0 0.0
    %223 = vmatpush.xpose.msra.mxu0 0.0
    %224 = vmatpush.xpose.msra.mxu0 0.0
    %225 = vmatpush.xpose.msra.mxu0 0.0
    %226 = vmatpush.xpose.msra.mxu0 0.0
    %227 = vmatpush.xpose.msra.mxu0 0.0
    %228 = vmatpush.xpose.msra.mxu0 0.0
    %229 = vmatpush.xpose.msra.mxu0 0.0
    %230 = vmatpush.xpose.msra.mxu0 0.0
    %231 = vmatpush.xpose.msra.mxu0 0.0
    %232 = vmatpush.xpose.msra.mxu0 0.0
    %233 = vmatpush.xpose.msra.mxu0 0.0
    %234 = vmatpush.xpose.msra.mxu0 %v217
    %235 = vmatmul.f32.gmra.mxu0 %v214
    %v236 = vpop.f32.mrf.mxu0
    %v237 = vadd.f32 0.0, %v236
    %238 = vdwg.mxu0
    %v240 = vsel %vm121, %v149, 0
    %v243 = vsel %vm121, %v180, 0
    %245 = vmatpush.xpose.msra.mxu0 0.0
    %246 = vmatpush.xpose.msra.mxu0 0.0
    %247 = vmatpush.xpose.msra.mxu0 0.0
    %248 = vmatpush.xpose.msra.mxu0 0.0
    %249 = vmatpush.xpose.msra.mxu0 0.0
    %250 = vmatpush.xpose.msra.mxu0 0.0
    %251 = vmatpush.xpose.msra.mxu0 0.0
    %252 = vmatpush.xpose.msra.mxu0 0.0
    %253 = vmatpush.xpose.msra.mxu0 0.0
    %254 = vmatpush.xpose.msra.mxu0 0.0
    %255 = vmatpush.xpose.msra.mxu0 0.0
    %256 = vmatpush.xpose.msra.mxu0 0.0
    %257 = vmatpush.xpose.msra.mxu0 0.0
    %258 = vmatpush.xpose.msra.mxu0 0.0
    %259 = vmatpush.xpose.msra.mxu0 0.0
    %260 = vmatpush.xpose.msra.mxu0 %v243
    %261 = vmatmul.f32.gmra.mxu0 %v240
    %v262 = vpop.f32.mrf.mxu0
    %v263 = vadd.f32 0.0, %v262
    %264 = vdwg.mxu0
    %vm265 = vcmask 64512
    %v266 = vsel %vm265, %v237, -inf
    %267 = vmax.xlane.f32.xlu0 %v266
    %v268 = vpop.xlane.xlu0 %267
    %v269 = vsel %vm265, %v263, -inf
    %270 = vmax.xlane.f32.xlu0 %v269
    %v271 = vpop.xlane.xlu0 %270
    %v272 = vsub.f32 %v237, %v268
    %v273 = vsub.f32 %v263, %v271
    %v274 = vmul.f32 %v272, 1.442695
    %v275 = vpow.pop %v274
    %v276 = vmul.f32 %v273, 1.442695
    %v277 = vpow.pop %v276
    %v278 = vsel %vm265, %v275, 0.0
    %279 = vadd.xlane.f32.xlu0 %v278
    %v280 = vpop.xlane.xlu0 %279
    %v281 = vsel %vm265, %v277, 0.0
    %282 = vadd.xlane.f32.xlu0 %v281
    %v283 = vpop.xlane.xlu0 %282
    %v285 = vsel %vm265, %v275, 0
    %287 = vmatpush.msra.mxu0 0.0
    %288 = vmatpush.msra.mxu0 0.0
    %289 = vmatpush.msra.mxu0 0.0
    %290 = vmatpush.msra.mxu0 0.0
    %291 = vmatpush.msra.mxu0 0.0
    %292 = vmatpush.msra.mxu0 0.0
    %293 = vmatpush.msra.mxu0 0.0
    %294 = vmatpush.msra.mxu0 0.0
    %295 = vmatpush.msra.mxu0 0.0
    %296 = vmatpush.msra.mxu0 0.0
    %297 = vmatpush.msra.mxu0 0.0
    %298 = vmatpush.msra.mxu0 0.0
    %299 = vmatpush.msra.mxu0 0.0
    %300 = vmatpush.msra.mxu0 0.0
    %301 = vmatpush.msra.mxu0 0.0
    %302 = vmatpush.msra.mxu0 %v208
    %303 = vmatmul.f32.gmra.mxu0 %v285
    %v304 = vpop.f32.mrf.mxu0
    %v305 = vadd.f32 0.0, %v304
    %306 = vdwg.mxu0
    %v308 = vsel %vm265, %v277, 0
    %310 = vmatpush.msra.mxu0 0.0
    %311 = vmatpush.msra.mxu0 0.0
    %312 = vmatpush.msra.mxu0 0.0
    %313 = vmatpush.msra.mxu0 0.0
    %314 = vmatpush.msra.mxu0 0.0
    %315 = vmatpush.msra.mxu0 0.0
    %316 = vmatpush.msra.mxu0 0.0
    %317 = vmatpush.msra.mxu0 0.0
    %318 = vmatpush.msra.mxu0 0.0
    %319 = vmatpush.msra.mxu0 0.0
    %320 = vmatpush.msra.mxu0 0.0
    %321 = vmatpush.msra.mxu0 0.0
    %322 = vmatpush.msra.mxu0 0.0
    %323 = vmatpush.msra.mxu0 0.0
    %324 = vmatpush.msra.mxu0 0.0
    %325 = vmatpush.msra.mxu0 %v211
    %326 = vmatmul.f32.gmra.mxu0 %v308
    %v327 = vpop.f32.mrf.mxu0
    %v328 = vadd.f32 0.0, %v327
    %329 = vdwg.mxu0
    %v330 = vrcp.pop %v280
    %v331 = vrcp.pop %v283
    %v332 = vmul.f32 %v305, %v330
    %v333 = vmul.f32 %v328, %v331
    %v334 = vld [vmem:[#allocation10] sm:$0xff]
    %v335 = vld [vmem:[#allocation10 + $0x8] sm:$0xff]
    %v336 = vld [vmem:[#allocation10 + $0x10] sm:$0xff]
    %v337 = vld [vmem:[#allocation10 + $0x18] sm:$0xff]
    %v338 = vld [vmem:[%s8] sm:$0x1]
    %v340 = vperm.slane %v338, 0
    %v343 = vsel %vm121, %v332, 0
    %v346 = vsel %vm121, %v333, 0
    %348 = vmatpush.msra.mxu0 0.0
    %349 = vmatpush.msra.mxu0 0.0
    %350 = vmatpush.msra.mxu0 0.0
    %351 = vmatpush.msra.mxu0 0.0
    %352 = vmatpush.msra.mxu0 0.0
    %353 = vmatpush.msra.mxu0 0.0
    %354 = vmatpush.msra.mxu0 0.0
    %355 = vmatpush.msra.mxu0 0.0
    %356 = vmatpush.msra.mxu0 0.0
    %357 = vmatpush.msra.mxu0 0.0
    %358 = vmatpush.msra.mxu0 0.0
    %359 = vmatpush.msra.mxu0 0.0
    %360 = vmatpush.msra.mxu0 %v337
    %361 = vmatpush.msra.mxu0 %v336
    %362 = vmatpush.msra.mxu0 %v335
    %363 = vmatpush.msra.mxu0 %v334
    %364 = vmatmul.f32.gmra.mxu0 %v343
    %v365 = vpop.f32.mrf.mxu0
    %v366 = vadd.f32 %v340, %v365
    %367 = vmatmul.f32.gmra.mxu0 %v346
    %v368 = vpop.f32.mrf.mxu0
    %v369 = vadd.f32 %v340, %v368
    %370 = vdwg.mxu0
    %371 = vst.msk [vmem:[#allocation11] sm:$0xff] %vm121, %v366
    %372 = vst.msk [vmem:[#allocation11 + $0x8] sm:$0xff] %vm121, %v369
    // Predicated region
    $region58: #{tpu_custom_call.1} parent=1 // pred_check
      _
    $region59: #{tpu_custom_call.1} parent=1 // pred_check_branch
      %374 = sbr.rel (0) target = $region61
    $region60: #{tpu_custom_call.1} parent=1 // pred_region
      %376 = vsyncadd [#allocation4], 0
      %s377 = sshll.u32 [#allocation11], 4
      %s378 = int_to_ptr.vmem [resolvable:$true] %s377
      %s379 = sshll.u32 %s9, 4
      %s380 = int_to_ptr.hbm [resolvable:$true] %s379
      %385 = dma.vmem_to_hbm [thread:$0]  %s378, 256, %s380, [#allocation4], 128, 128, 8
    $region61: #{tpu_custom_call.1} parent=1 // pred_fallthru
      _
    // Predicated region
    $region62: #{tpu_custom_call.1} parent=1 // pred_check
      _
    $region63: #{tpu_custom_call.1} parent=1 // pred_check_branch
      %387 = sbr.rel (0) target = $region65
    $region64: #{tpu_custom_call.1} parent=1 // pred_region
      %389 = dma.done [#allocation4], 256
    $region65: #{tpu_custom_call.1} parent=1 // pred_fallthru
      _
    %390 = vsyncpa [#allocation3], 1
    %391 = vsyncpa [#allocation6], 1
    %392 = vsyncpa [#allocation9], 1
    %393 = vsyncpa [#allocation4], 1

</llo_original>
